<compile_context>
chip_gen: v7x
topology: tpu7x:2x2x1
jax: 0.10.0
libtpu: 0.0.40
codegen_flags: <defaults>
</compile_context>

<pallas_src>
import functools

import jax
import jax.numpy as jnp
from jax.experimental import pallas as pl
from jax.experimental.pallas import tpu as pltpu


def _round_up(n, m):
    return ((n + m - 1) // m) * m


def _device_kind():
    try:
        return jax.devices()[0].device_kind.lower()
    except Exception:
        return ""


def _vmem_capacity_bytes():
    try:
        cap = int(pltpu.get_tpu_info().vmem_capacity_bytes)
        if cap > 0:
            return cap
    except Exception:
        pass
    kind = _device_kind()
    if "v2" in kind or "v3" in kind:
        return 16 << 20
    if "v4" in kind or "v5" in kind or "v6" in kind:
        return 128 << 20
    return 64 << 20            # v7x-safe default when unknown


def _mxu_lane_align():
    kind = _device_kind()
    if "v6" in kind or "v7" in kind:
        return 256             # 2x256x256 MXU: fill both N and K
    return 128                 # 128x128-class MXUs (v2..v5e)


def _is_v7x():
    return "v7" in _device_kind()


_HAS_BUFFERED = hasattr(pl, "Buffered")


def _spec(shape, index_map, buffers=None):
    """BlockSpec helper; optionally requests an explicit buffer count."""
    if buffers is not None and _HAS_BUFFERED:
        return pl.BlockSpec(shape, index_map, pipeline_mode=pl.Buffered(buffers))
    return pl.BlockSpec(shape, index_map)


# ----------------------------- kernels ------------------------------------ #
def _fused_kernel(x_ref, w1_ref, b1_ref, w2_ref, b2_ref, o_ref):
    # Both matmuls on the MXU with f32 accumulation; bias-add / ReLU epilogue
    # stays in f32 on the VPU. All weights are VMEM-resident.
    h = jnp.dot(x_ref[...], w1_ref[...], preferred_element_type=jnp.float32)
    h = jnp.maximum(h + b1_ref[...], 0.0)                  # b1 is (1, Hp)
    out = jnp.dot(h.astype(w2_ref.dtype), w2_ref[...],
                  preferred_element_type=jnp.float32)
    o_ref[...] = (out + b2_ref[...]).astype(o_ref.dtype)   # b2 is (1, Op)


def _hidden_tiled_kernel(x_ref, w1_ref, b1_ref, w2_ref, b2_ref, o_ref, acc_ref):
    # Fallback when the weights cannot be fully VMEM-resident: stream tiles of
    # the hidden dim, accumulate the second matmul in an f32 VMEM scratch.
    h_idx = pl.program_id(1)

    @pl.when(h_idx == 0)
    def _():
        acc_ref[...] = jnp.zeros_like(acc_ref)

    h = jnp.dot(x_ref[...], w1_ref[...], preferred_element_type=jnp.float32)
    h = jnp.maximum(h + b1_ref[...], 0.0)
    acc_ref[...] += jnp.dot(h.astype(w2_ref.dtype), w2_ref[...],
                            preferred_element_type=jnp.float32)

    @pl.when(h_idx == pl.num_programs(1) - 1)
    def _():
        o_ref[...] = (acc_ref[...] + b2_ref[...]).astype(o_ref.dtype)


# --------------------------- tile selection -------------------------------- #
def _pick_batch_tile(batch, stream_row, interm_row, resident_bytes,
                     vmem_target, sub, max_tile=1024):
    """Largest batch tile whose (2x-buffered streams + intermediates + resident
    weights) footprint fits the VMEM target."""
    tb = min(max_tile, _round_up(max(batch, sub), sub))
    while tb > sub and (resident_bytes + 2 * tb * stream_row
                        + tb * interm_row) > vmem_target:
        tb = max(sub, _round_up(tb // 2, sub))
    return tb


def _pick_hidden_tile(hp, align, fp, op, in_bytes, budget):
    """Largest hidden tile (multiple of `align`, dividing hp) whose 2x-buffered
    per-step weight tiles fit `budget`."""
    for k in range(max(hp // align, 1), 0, -1):
        th = align * k
        if hp % th:
            continue
        if 2 * ((fp * th + th * op) * in_bytes + th * 4) <= budget:
            return th
    return align


# ------------------------------ wrappers ----------------------------------- #
def prepare_params(w1, b1, w2, b2, *, mxu_dtype=None, lane_align=None):
    """Pad / cast the weights ONCE (call this outside the per-call jit)."""
    align = lane_align or _mxu_lane_align()
    F, H = w1.shape
    O = w2.shape[1]
    Fp = _round_up(max(F, align), align)
    Hp = _round_up(max(H, align), align)
    Op = _round_up(max(O, align), align)
    if (Fp, Hp) != (F, H):
        w1 = jnp.pad(w1, ((0, Fp - F), (0, Hp - H)))
    if Hp != H:
        b1 = jnp.pad(b1, ((0, 0), (0, Hp - H)))
    if (Hp, Op) != (H, O):
        w2 = jnp.pad(w2, ((0, Hp - H), (0, Op - O)))
    if Op != O:
        b2 = jnp.pad(b2, ((0, 0), (0, Op - O)))
    if mxu_dtype is not None:
        w1 = w1.astype(mxu_dtype)
        w2 = w2.astype(mxu_dtype)
    b1 = b1.astype(jnp.float32)   # epilogue stays in f32 (v5e VPU has no bf16)
    b2 = b2.astype(jnp.float32)
    return w1, b1, w2, b2, O


@functools.partial(
    jax.jit,
    static_argnames=("output_size", "mxu_dtype", "block_batch", "block_hidden",
                     "weight_buffers"))
def projection_head(x, w1, b1, w2, b2, *, output_size=None, mxu_dtype=None,
                    block_batch=None, block_hidden=None, weight_buffers=1):
    """x: [B, F]; w1: [F, H]; b1: [1, H]; w2: [H, O]; b2: [1, O] -> [B, O].

    Weights may be pre-padded / pre-cast with prepare_params(); in that case
    the pads below are no-ops and `output_size` must give the true O.
    """
    B, F = x.shape
    out_dtype = x.dtype
    align = _mxu_lane_align()
    O = output_size if output_size is not None else w2.shape[1]

    # --- MXU/lane-aligned zero-padding (no-ops for pre-padded params). ---
    Fp = _round_up(max(w1.shape[0], align), align)
    Hp = _round_up(max(w1.shape[1], w2.shape[0], align), align)
    Op = _round_up(max(w2.shape[1], align), align)
    if w1.shape != (Fp, Hp):
        w1 = jnp.pad(w1, ((0, Fp - w1.shape[0]), (0, Hp - w1.shape[1])))
    if b1.shape[1] != Hp:
        b1 = jnp.pad(b1, ((0, 0), (0, Hp - b1.shape[1])))
    if w2.shape != (Hp, Op):
        w2 = jnp.pad(w2, ((0, Hp - w2.shape[0]), (0, Op - w2.shape[1])))
    if b2.shape[1] != Op:
        b2 = jnp.pad(b2, ((0, 0), (0, Op - b2.shape[1])))
    if mxu_dtype is not None:
        x = x.astype(mxu_dtype)
        w1 = w1.astype(mxu_dtype)
        w2 = w2.astype(mxu_dtype)
    b1 = b1.astype(jnp.float32)
    b2 = b2.astype(jnp.float32)
    if Fp != F:
        x = jnp.pad(x, ((0, 0), (0, Fp - F)))   # lane-dense x loads, full K-depth

    in_bytes = jnp.dtype(x.dtype).itemsize
    out_bytes = jnp.dtype(out_dtype).itemsize
    sub = {4: 8, 2: 16, 1: 32}.get(in_bytes, 8)      # dtype-aware sublane rounding

    capacity = _vmem_capacity_bytes()
    vmem_target = max(int(capacity * 0.75), 8 << 20)  # ~96 MiB v5e/v6e, ~48 MiB v7x

    single_buffer_weights = (weight_buffers == 1) and _HAS_BUFFERED
    wbuf_count = 1 if single_buffer_weights else 2
    res_buffers = 1 if single_buffer_weights else None
    resident_full = ((Fp * Hp + Hp * Op) * in_bytes + (Hp + Op) * 4) * wbuf_count

    use_hidden_tiling = (block_hidden is not None) or (resident_full > vmem_target // 2)

    if not use_hidden_tiling:
        # ---------- fully-resident-weight path (batch-streamed) ----------
        stream_row = Fp * in_bytes + Op * out_bytes
        interm_row = (Hp + Op) * 4
        if block_batch is None:
            TB = _pick_batch_tile(B, stream_row, interm_row, resident_full,
                                  vmem_target, sub)
        else:
            TB = max(sub, _round_up(min(block_batch, _round_up(B, sub)), sub))
        if _is_v7x() and _round_up(B, sub) >= 2 * sub:
            TB = min(TB, _round_up(-(-B // 2), sub))   # >=2 grid steps for 2 TCs
        Bp = _round_up(B, TB)
        if Bp != B:
            x = jnp.pad(x, ((0, Bp - B), (0, 0)))

        req = resident_full + 2 * TB * stream_row + TB * interm_row
        vmem_limit = int(min(max(int(req * 1.5), min(32 << 20, capacity)), capacity))

        out = pl.pallas_call(
            _fused_kernel,
            out_shape=jax.ShapeDtypeStruct((Bp, Op), out_dtype),
            grid_spec=pltpu.PrefetchScalarGridSpec(
                num_scalar_prefetch=0,
                grid=(Bp // TB,),
                in_specs=[
                    _spec((TB, Fp), lambda i: (i, 0)),                      # streamed
                    _spec((Fp, Hp), lambda i: (0, 0), buffers=res_buffers),  # resident
                    _spec((1, Hp),  lambda i: (0, 0), buffers=res_buffers),
                    _spec((Hp, Op), lambda i: (0, 0), buffers=res_buffers),
                    _spec((1, Op),  lambda i: (0, 0), buffers=res_buffers),
                ],
                out_specs=pl.BlockSpec((TB, Op), lambda i: (i, 0)),
            ),
            compiler_params=pltpu.CompilerParams(
                dimension_semantics=("parallel",),   # v7x: shard batch across 2 TCs
                vmem_limit_bytes=vmem_limit,
            ),
        )(x, w1, b1, w2, b2)
        return out[:B, :O]

    # ---------- hidden-tiled fallback (weights too big to keep resident) ----------
    if block_hidden is not None:
        TH = max(align, (block_hidden // align) * align)
        if Hp % TH != 0:
            TH = _pick_hidden_tile(Hp, align, Fp, Op, in_bytes, vmem_target // 2)
    else:
        TH = _pick_hidden_tile(Hp, align, Fp, Op, in_bytes, vmem_target // 2)

    resident_k = (2 * ((Fp * TH + TH * Op) * in_bytes + TH * 4)   # streamed W tiles
                  + Op * 4 * wbuf_count)                          # resident b2
    stream_row = Fp * in_bytes + Op * out_bytes
    interm_row = (TH + 2 * Op) * 4                                # h tile + acc + out
    if block_batch is None:
        TB = _pick_batch_tile(B, stream_row, interm_row, resident_k,
                              vmem_target, sub)
    else:
        TB = max(sub, _round_up(min(block_batch, _round_up(B, sub)), sub))
    if _is_v7x() and _round_up(B, sub) >= 2 * sub:
        TB = min(TB, _round_up(-(-B // 2), sub))
    Bp = _round_up(B, TB)
    if Bp != B:
        x = jnp.pad(x, ((0, Bp - B), (0, 0)))

    req = resident_k + 2 * TB * stream_row + TB * interm_row
    vmem_limit = int(min(max(int(req * 1.5), min(32 << 20, capacity)), capacity))

    out = pl.pallas_call(
        _hidden_tiled_kernel,
        out_shape=jax.ShapeDtypeStruct((Bp, Op), out_dtype),
        grid_spec=pltpu.PrefetchScalarGridSpec(
            num_scalar_prefetch=0,
            grid=(Bp // TB, Hp // TH),
            in_specs=[
                _spec((TB, Fp), lambda i, h: (i, 0)),   # streamed over batch
                _spec((Fp, TH), lambda i, h: (0, h)),   # streamed over hidden
                _spec((1, TH),  lambda i, h: (0, h)),
                _spec((TH, Op), lambda i, h: (h, 0)),
                _spec((1, Op),  lambda i, h: (0, 0), buffers=res_buffers),
            ],
            out_specs=pl.BlockSpec((TB, Op), lambda i, h: (i, 0)),
            scratch_shapes=[pltpu.VMEM((TB, Op), jnp.float32)],
        ),
        compiler_params=pltpu.CompilerParams(
            dimension_semantics=("parallel", "arbitrary"),
            vmem_limit_bytes=vmem_limit,
        ),
    )(x, w1, b1, w2, b2)
    return out[:B, :O]


# ------------------------------- demo / test ------------------------------- #
if __name__ == "__main__":
    key = jax.random.PRNGKey(0)

    def make_case(case_key, batch, input_size, hidden_size, output_size):
        kx, kp = jax.random.split(case_key)
        x = jax.random.normal(kx, (batch, input_size), jnp.float32)
        k1, k2, k3, k4 = jax.random.split(kp, 4)
        lim1 = 1.0 / jnp.sqrt(input_size)
        lim2 = 1.0 / jnp.sqrt(hidden_size)
        w1 = jax.random.uniform(k1, (input_size, hidden_size), jnp.float32, -lim1, lim1)
        b1 = jax.random.uniform(k2, (1, hidden_size), jnp.float32, -lim1, lim1)
        w2 = jax.random.uniform(k3, (hidden_size, output_size), jnp.float32, -lim2, lim2)
        b2 = jax.random.uniform(k4, (1, output_size), jnp.float32, -lim2, lim2)
        ref = jnp.maximum(x @ w1 + b1, 0.0) @ w2 + b2   # plain-JAX reference
        return x, (w1, b1, w2, b2), ref

    def run_checks(weight_buffers):
        k1, k2 = jax.random.split(key)

        # Case 1: small ProjectionHead, f32, fully-resident-weight path;
        # params padded / cast once outside the jitted call.
        x, params, ref = make_case(k1, 8, 32, 64, 16)
        w1p, b1p, w2p, b2p, O = prepare_params(*params)
        out = jax.block_until_ready(
            projection_head(x, w1p, b1p, w2p, b2p, output_size=O,
                            weight_buffers=weight_buffers))
        assert out.shape == (8, 16)
        assert jnp.allclose(out, ref, atol=1e-5, rtol=1e-5), "f32 path mismatch"

        # Case 2: bf16 MXU operands with f32 accumulation (mixed precision).
        w1b, b1b, w2b, b2b, O = prepare_params(*params, mxu_dtype=jnp.bfloat16)
        out_bf16 = jax.block_until_ready(
            projection_head(x, w1b, b1b, w2b, b2b, output_size=O,
                            mxu_dtype=jnp.bfloat16,
                            weight_buffers=weight_buffers))
        assert out_bf16.shape == (8, 16)
        assert jnp.allclose(out_bf16, ref, atol=5e-2, rtol=5e-2), "bf16 path mismatch"

        # Case 3: hidden-tiled fallback path (forced small tiles) — exercises
        # the f32 accumulator + pl.when init/finalize over >=2 hidden steps.
        x3, params3, ref3 = make_case(k2, 32, 96, 512, 48)
        w1p, b1p, w2p, b2p, O3 = prepare_params(*params3)
        out3 = jax.block_until_ready(
            projection_head(x3, w1p, b1p, w2p, b2p, output_size=O3,
                            block_batch=16, block_hidden=256,
                            weight_buffers=weight_buffers))
        assert out3.shape == (32, 48)
        assert jnp.allclose(out3, ref3, atol=1e-4, rtol=1e-4), "hidden-tiled mismatch"

    try:
        run_checks(1)   # preferred: single-buffered resident weights
    except Exception:
        run_checks(2)   # fallback: default double-buffered weights
    print("KERNEL_OK")
</pallas_src>

<mosaic_0001>
module attributes {stable_mosaic.version = 11 : i64} {
  func.func @_fused_kernel(%arg0: i32, %arg1: memref<8x128xf32, #tpu.memory_space<vmem>>, %arg2: memref<128x128xf32, #tpu.memory_space<vmem>>, %arg3: memref<1x128xf32, #tpu.memory_space<vmem>>, %arg4: memref<128x128xf32, #tpu.memory_space<vmem>>, %arg5: memref<1x128xf32, #tpu.memory_space<vmem>>, %arg6: memref<8x128xf32, #tpu.memory_space<vmem>>) attributes {dimension_semantics = [#tpu.dimension_semantics<parallel>], iteration_bounds = array<i64: 1>, scalar_prefetch = 0 : i64, scratch_operands = 0 : i64, tpu.core_type = #tpu.core_type<tc>, window_params = [{transform_indices = @transform_0, window_bounds = array<i64: 8, 128>}, {pipeline_mode = #tpu.pipeline_mode<synchronous>, transform_indices = @transform_1, window_bounds = array<i64: 128, 128>}, {pipeline_mode = #tpu.pipeline_mode<synchronous>, transform_indices = @transform_2, window_bounds = array<i64: 1, 128>}, {pipeline_mode = #tpu.pipeline_mode<synchronous>, transform_indices = @transform_3, window_bounds = array<i64: 128, 128>}, {pipeline_mode = #tpu.pipeline_mode<synchronous>, transform_indices = @transform_4, window_bounds = array<i64: 1, 128>}, {transform_indices = @transform_5, window_bounds = array<i64: 8, 128>}]} {
    %c0 = arith.constant 0 : index
    %c0_0 = arith.constant 0 : index
    %0 = vector.load %arg1[%c0, %c0_0] : memref<8x128xf32, #tpu.memory_space<vmem>>, vector<8x128xf32>
    %c0_1 = arith.constant 0 : index
    %c0_2 = arith.constant 0 : index
    %1 = vector.load %arg2[%c0_1, %c0_2] : memref<128x128xf32, #tpu.memory_space<vmem>>, vector<128x128xf32>
    %cst = arith.constant dense<0.000000e+00> : vector<8x128xf32>
    %2 = tpu.matmul %0, %1, %cst {dimension_numbers = #tpu.dot_dimension_numbers<[1], [0], [0], [1], [0, 0, 1, 1], [], []>} : vector<8x128xf32>, vector<128x128xf32>, vector<8x128xf32> -> vector<8x128xf32>
    %c0_3 = arith.constant 0 : index
    %c0_4 = arith.constant 0 : index
    %3 = vector.load %arg3[%c0_3, %c0_4] : memref<1x128xf32, #tpu.memory_space<vmem>>, vector<1x128xf32>
    %4 = vector.broadcast %3 : vector<1x128xf32> to vector<8x128xf32>
    %5 = arith.addf %2, %4 : vector<8x128xf32>
    %cst_5 = arith.constant 0.000000e+00 : f32
    %6 = vector.broadcast %cst_5 : f32 to vector<8x128xf32>
    %7 = arith.maximumf %5, %6 : vector<8x128xf32>
    %c0_6 = arith.constant 0 : index
    %c0_7 = arith.constant 0 : index
    %8 = vector.load %arg4[%c0_6, %c0_7] : memref<128x128xf32, #tpu.memory_space<vmem>>, vector<128x128xf32>
    %cst_8 = arith.constant dense<0.000000e+00> : vector<8x128xf32>
    %9 = tpu.matmul %7, %8, %cst_8 {dimension_numbers = #tpu.dot_dimension_numbers<[1], [0], [0], [1], [0, 0, 1, 1], [], []>} : vector<8x128xf32>, vector<128x128xf32>, vector<8x128xf32> -> vector<8x128xf32>
    %c0_9 = arith.constant 0 : index
    %c0_10 = arith.constant 0 : index
    %10 = vector.load %arg5[%c0_9, %c0_10] : memref<1x128xf32, #tpu.memory_space<vmem>>, vector<1x128xf32>
    %11 = vector.broadcast %10 : vector<1x128xf32> to vector<8x128xf32>
    %12 = arith.addf %9, %11 : vector<8x128xf32>
    %c0_11 = arith.constant 0 : index
    %c0_12 = arith.constant 0 : index
    %13 = vector.load %arg6[%c0_11, %c0_12] : memref<8x128xf32, #tpu.memory_space<vmem>>, vector<8x128xf32>
    tpu.vector_store %arg6[%c0_11, %c0_12], %12 {strides = array<i32>} : memref<8x128xf32, #tpu.memory_space<vmem>>, vector<8x128xf32>,
    return
  }
  func.func @transform_0(%arg0: i32) -> (i32, i32) {
    %c0_i32 = arith.constant 0 : i32
    %c0_i32_0 = arith.constant 0 : i32
    return %arg0, %c0_i32 : i32, i32
  }
  func.func @transform_1(%arg0: i32) -> (i32, i32) {
    %c0_i32 = arith.constant 0 : i32
    %c0_i32_0 = arith.constant 0 : i32
    %c0_i32_1 = arith.constant 0 : i32
    return %c0_i32, %c0_i32_0 : i32, i32
  }
  func.func @transform_2(%arg0: i32) -> (i32, i32) {
    %c0_i32 = arith.constant 0 : i32
    %c0_i32_0 = arith.constant 0 : i32
    %c0_i32_1 = arith.constant 0 : i32
    return %c0_i32, %c0_i32_0 : i32, i32
  }
  func.func @transform_3(%arg0: i32) -> (i32, i32) {
    %c0_i32 = arith.constant 0 : i32
    %c0_i32_0 = arith.constant 0 : i32
    %c0_i32_1 = arith.constant 0 : i32
    return %c0_i32, %c0_i32_0 : i32, i32
  }
  func.func @transform_4(%arg0: i32) -> (i32, i32) {
    %c0_i32 = arith.constant 0 : i32
    %c0_i32_0 = arith.constant 0 : i32
    %c0_i32_1 = arith.constant 0 : i32
    return %c0_i32, %c0_i32_0 : i32, i32
  }
  func.func @transform_5(%arg0: i32) -> (i32, i32) {
    %c0_i32 = arith.constant 0 : i32
    %c0_i32_0 = arith.constant 0 : i32
    return %arg0, %c0_i32 : i32, i32
  }
}

module attributes {stable_mosaic.version = 11 : i64} {
  func.func @_fused_kernel(%arg0: i32, %arg1: memref<8x128xf32, #tpu.memory_space<vmem>>, %arg2: memref<128x128xf32, #tpu.memory_space<vmem>>, %arg3: memref<1x128xf32, #tpu.memory_space<vmem>>, %arg4: memref<128x128xf32, #tpu.memory_space<vmem>>, %arg5: memref<1x128xf32, #tpu.memory_space<vmem>>, %arg6: memref<8x128xf32, #tpu.memory_space<vmem>>) attributes {dimension_semantics = [#tpu.dimension_semantics<parallel>], iteration_bounds = array<i64: 1>, scalar_prefetch = 0 : i64, scratch_operands = 0 : i64, tpu.core_type = #tpu.core_type<tc>, window_params = [{transform_indices = @transform_0, window_bounds = array<i64: 8, 128>}, {pipeline_mode = #tpu.pipeline_mode<synchronous>, transform_indices = @transform_1, window_bounds = array<i64: 128, 128>}, {pipeline_mode = #tpu.pipeline_mode<synchronous>, transform_indices = @transform_2, window_bounds = array<i64: 1, 128>}, {pipeline_mode = #tpu.pipeline_mode<synchronous>, transform_indices = @transform_3, window_bounds = array<i64: 128, 128>}, {pipeline_mode = #tpu.pipeline_mode<synchronous>, transform_indices = @transform_4, window_bounds = array<i64: 1, 128>}, {transform_indices = @transform_5, window_bounds = array<i64: 8, 128>}]} {
    %c0 = arith.constant 0 : index
    %c0_0 = arith.constant 0 : index
    %0 = vector.load %arg1[%c0, %c0_0] : memref<8x128xf32, #tpu.memory_space<vmem>>, vector<8x128xf32>
    %c0_1 = arith.constant 0 : index
    %c0_2 = arith.constant 0 : index
    %1 = vector.load %arg2[%c0_1, %c0_2] : memref<128x128xf32, #tpu.memory_space<vmem>>, vector<128x128xf32>
    %cst = arith.constant dense<0.000000e+00> : vector<8x128xf32>
    %2 = tpu.matmul %0, %1, %cst {dimension_numbers = #tpu.dot_dimension_numbers<[1], [0], [0], [1], [0, 0, 1, 1], [], []>} : vector<8x128xf32>, vector<128x128xf32>, vector<8x128xf32> -> vector<8x128xf32>
    %c0_3 = arith.constant 0 : index
    %c0_4 = arith.constant 0 : index
    %3 = vector.load %arg3[%c0_3, %c0_4] : memref<1x128xf32, #tpu.memory_space<vmem>>, vector<1x128xf32>
    %4 = vector.broadcast %3 : vector<1x128xf32> to vector<8x128xf32>
    %5 = arith.addf %2, %4 : vector<8x128xf32>
    %cst_5 = arith.constant 0.000000e+00 : f32
    %6 = vector.broadcast %cst_5 : f32 to vector<8x128xf32>
    %7 = arith.maximumf %5, %6 : vector<8x128xf32>
    %c0_6 = arith.constant 0 : index
    %c0_7 = arith.constant 0 : index
    %8 = vector.load %arg4[%c0_6, %c0_7] : memref<128x128xf32, #tpu.memory_space<vmem>>, vector<128x128xf32>
    %cst_8 = arith.constant dense<0.000000e+00> : vector<8x128xf32>
    %9 = tpu.matmul %7, %8, %cst_8 {dimension_numbers = #tpu.dot_dimension_numbers<[1], [0], [0], [1], [0, 0, 1, 1], [], []>} : vector<8x128xf32>, vector<128x128xf32>, vector<8x128xf32> -> vector<8x128xf32>
    %c0_9 = arith.constant 0 : index
    %c0_10 = arith.constant 0 : index
    %10 = vector.load %arg5[%c0_9, %c0_10] : memref<1x128xf32, #tpu.memory_space<vmem>>, vector<1x128xf32>
    %11 = vector.broadcast %10 : vector<1x128xf32> to vector<8x128xf32>
    %12 = arith.addf %9, %11 : vector<8x128xf32>
    %c0_11 = arith.constant 0 : index
    %c0_12 = arith.constant 0 : index
    %13 = vector.load %arg6[%c0_11, %c0_12] : memref<8x128xf32, #tpu.memory_space<vmem>>, vector<8x128xf32>
    tpu.vector_store %arg6[%c0_11, %c0_12], %12 {strides = array<i32>} : memref<8x128xf32, #tpu.memory_space<vmem>>, vector<8x128xf32>,
    return
  }
  func.func @transform_0(%arg0: i32) -> (i32, i32) {
    %c0_i32 = arith.constant 0 : i32
    %c0_i32_0 = arith.constant 0 : i32
    return %arg0, %c0_i32 : i32, i32
  }
  func.func @transform_1(%arg0: i32) -> (i32, i32) {
    %c0_i32 = arith.constant 0 : i32
    %c0_i32_0 = arith.constant 0 : i32
    %c0_i32_1 = arith.constant 0 : i32
    return %c0_i32, %c0_i32_0 : i32, i32
  }
  func.func @transform_2(%arg0: i32) -> (i32, i32) {
    %c0_i32 = arith.constant 0 : i32
    %c0_i32_0 = arith.constant 0 : i32
    %c0_i32_1 = arith.constant 0 : i32
    return %c0_i32, %c0_i32_0 : i32, i32
  }
  func.func @transform_3(%arg0: i32) -> (i32, i32) {
    %c0_i32 = arith.constant 0 : i32
    %c0_i32_0 = arith.constant 0 : i32
    %c0_i32_1 = arith.constant 0 : i32
    return %c0_i32, %c0_i32_0 : i32, i32
  }
  func.func @transform_4(%arg0: i32) -> (i32, i32) {
    %c0_i32 = arith.constant 0 : i32
    %c0_i32_0 = arith.constant 0 : i32
    %c0_i32_1 = arith.constant 0 : i32
    return %c0_i32, %c0_i32_0 : i32, i32
  }
  func.func @transform_5(%arg0: i32) -> (i32, i32) {
    %c0_i32 = arith.constant 0 : i32
    %c0_i32_0 = arith.constant 0 : i32
    return %arg0, %c0_i32 : i32, i32
  }
}

</mosaic_0001>

<llo_original>
// kernel: projection_head.1
$region0: #{projection_head.1}
  #allocation0 [shape = 'u32[]', space=smem, size = 0x4, offset = 0x4, fixed_abs, tag = 'smem constant byte address 0x4 - core index']
  #allocation1 [shape = 'u32[144,128]{1,0:T(1,128)}', space=vmem, size = 0x12000, scoped, tag = 'internal scratch']
  %s0 = inlined_call_operand.vmem [shape: f32[8,128], index: 0, kind: input, shape index: {}]
  %s1 = inlined_call_operand.hbm [shape: f32[128,128], index: 1, kind: input, shape index: {}]
  %s2 = inlined_call_operand.vmem [shape: f32[1,128], index: 2, kind: input, shape index: {}]
  %s3 = inlined_call_operand.hbm [shape: f32[128,128], index: 3, kind: input, shape index: {}]
  %s4 = inlined_call_operand.vmem [shape: f32[1,128], index: 4, kind: input, shape index: {}]
  %s5 = inlined_call_operand.hbm [shape: f32[8,128], index: 5, kind: output, shape index: {}]
  %s6 = sld [smem:[#allocation0]]
  $region38: #{projection_head.1} parent=0
    _
  %s8 = ssub.s32 1, %s6
  %s9 = scalar_select 0, %s8, %s6
  $region1: #{projection_head.1} parent=0
    #allocation2 [shape = 'u8[65536]{0}', space=vmem, size = 0x10000, scoped, tag = 'input window, operand 1, single buffered']
    #allocation3 [shape = 's32[1]{0}', space=sflag, size = 0x4, scoped, tag = 'scoped memory for projection_head.1']
    #allocation4 [shape = 's32[1]{0}', space=sflag, size = 0x4, scoped, tag = 'scoped memory for projection_head.1']
    #allocation5 [shape = 'u8[65536]{0}', space=vmem, size = 0x10000, scoped, tag = 'input window, operand 3, single buffered']
    #allocation6 [shape = 's32[1]{0}', space=sflag, size = 0x4, scoped, tag = 'scoped memory for projection_head.1']
    #allocation7 [shape = 'u8[4096]{0}', space=vmem, size = 0x1000, scoped, tag = 'output window, operand 0, single buffered']
    %10 = vsyncpa [#allocation3], 0
    %11 = vsyncpa [#allocation6], 0
    %12 = vsyncpa [#allocation4], 0
    // Predicated region
    $region2: #{projection_head.1} parent=1 // pred_check
      _
    $region3: #{projection_head.1} parent=1 // pred_check_branch
      %14 = sbr.rel (0) target = $region5
    $region4: #{projection_head.1} parent=1 // pred_region
      _
    $region5: #{projection_head.1} parent=1 // pred_fallthru
      _
    // Predicated region
    $region6: #{projection_head.1} parent=1 // pred_check
      _
    $region7: #{projection_head.1} parent=1 // pred_check_branch
      %16 = sbr.rel (0) target = $region9
    $region8: #{projection_head.1} parent=1 // pred_region
      %s18 = ssub.s32 2048, 2048
      %19 = vsyncadd [#allocation3], %s18
      %s20 = sshll.u32 [#allocation2], 4
      %s21 = int_to_ptr.vmem [resolvable:$true] %s20
      %26 = dma.hbm_to_vmem [thread:$0]  %s1, 2048, %s21, [#allocation3], 128, 128, 8
    $region9: #{projection_head.1} parent=1 // pred_fallthru
      _
    // Predicated region
    $region10: #{projection_head.1} parent=1 // pred_check
      _
    $region11: #{projection_head.1} parent=1 // pred_check_branch
      %28 = sbr.rel (0) target = $region13
    $region12: #{projection_head.1} parent=1 // pred_region
      _
    $region13: #{projection_head.1} parent=1 // pred_fallthru
      _
    // Predicated region
    $region14: #{projection_head.1} parent=1 // pred_check
      _
    $region15: #{projection_head.1} parent=1 // pred_check_branch
      %30 = sbr.rel (0) target = $region17
    $region16: #{projection_head.1} parent=1 // pred_region
      %s32 = ssub.s32 2048, 2048
      %33 = vsyncadd [#allocation6], %s32
      %s34 = sshll.u32 [#allocation5], 4
      %s35 = int_to_ptr.vmem [resolvable:$true] %s34
      %40 = dma.hbm_to_vmem [thread:$0]  %s3, 2048, %s35, [#allocation6], 128, 128, 8
    $region17: #{projection_head.1} parent=1 // pred_fallthru
      _
    // Predicated region
    $region18: #{projection_head.1} parent=1 // pred_check
      _
    $region19: #{projection_head.1} parent=1 // pred_check_branch
      %42 = sbr.rel (0) target = $region21
    $region20: #{projection_head.1} parent=1 // pred_region
      _
    $region21: #{projection_head.1} parent=1 // pred_fallthru
      _
    // Predicated region
    $region22: #{projection_head.1} parent=1 // pred_check
      _
    $region23: #{projection_head.1} parent=1 // pred_check_branch
      %44 = sbr.rel (0) target = $region25
    $region24: #{projection_head.1} parent=1 // pred_region
      %45 = dma.done [#allocation3], 2048
    $region25: #{projection_head.1} parent=1 // pred_fallthru
      _
    // Predicated region
    $region26: #{projection_head.1} parent=1 // pred_check
      _
    $region27: #{projection_head.1} parent=1 // pred_check_branch
      %47 = sbr.rel (0) target = $region29
    $region28: #{projection_head.1} parent=1 // pred_region
      %48 = dma.done [#allocation6], 2048
    $region29: #{projection_head.1} parent=1 // pred_fallthru
      _
    %v49 = vld [vmem:[%s0] sm:$0xff]
    %v50 = vld [vmem:[#allocation2] sm:$0xff]
    %v51 = vld [vmem:[#allocation2 + $0x8] sm:$0xff]
    %v52 = vld [vmem:[#allocation2 + $0x10] sm:$0xff]
    %v53 = vld [vmem:[#allocation2 + $0x18] sm:$0xff]
    %v54 = vld [vmem:[#allocation2 + $0x20] sm:$0xff]
    %v55 = vld [vmem:[#allocation2 + $0x28] sm:$0xff]
    %v56 = vld [vmem:[#allocation2 + $0x30] sm:$0xff]
    %v57 = vld [vmem:[#allocation2 + $0x38] sm:$0xff]
    %v58 = vld [vmem:[#allocation2 + $0x40] sm:$0xff]
    %v59 = vld [vmem:[#allocation2 + $0x48] sm:$0xff]
    %v60 = vld [vmem:[#allocation2 + $0x50] sm:$0xff]
    %v61 = vld [vmem:[#allocation2 + $0x58] sm:$0xff]
    %v62 = vld [vmem:[#allocation2 + $0x60] sm:$0xff]
    %v63 = vld [vmem:[#allocation2 + $0x68] sm:$0xff]
    %v64 = vld [vmem:[#allocation2 + $0x70] sm:$0xff]
    %v65 = vld [vmem:[#allocation2 + $0x78] sm:$0xff]
    %v66 = vld [vmem:[%s2] sm:$0x1]
    %v68 = vlaneseq
    %v69 = vshrl.u32 %v68, 7
    %v70 = vsub.s32 0, %v69
    %v71 = vrot.slane %v66, %v70
    %73 = vmatprep.subr.mxu0 0.0
    %74 = vmatpush1.msra.mxu0 %v50
    %75 = vmatprep.subr.mxu0 0.0
    %76 = vmatpush1.msra.mxu0 %v51
    %77 = vmatprep.subr.mxu0 0.0
    %78 = vmatpush1.msra.mxu0 %v52
    %79 = vmatprep.subr.mxu0 0.0
    %80 = vmatpush1.msra.mxu0 %v53
    %81 = vmatprep.subr.mxu0 0.0
    %82 = vmatpush1.msra.mxu0 %v54
    %83 = vmatprep.subr.mxu0 0.0
    %84 = vmatpush1.msra.mxu0 %v55
    %85 = vmatprep.subr.mxu0 0.0
    %86 = vmatpush1.msra.mxu0 %v56
    %87 = vmatprep.subr.mxu0 0.0
    %88 = vmatpush1.msra.mxu0 %v57
    %89 = vmatprep.subr.mxu0 0.0
    %90 = vmatpush1.msra.mxu0 %v58
    %91 = vmatprep.subr.mxu0 0.0
    %92 = vmatpush1.msra.mxu0 %v59
    %93 = vmatprep.subr.mxu0 0.0
    %94 = vmatpush1.msra.mxu0 %v60
    %95 = vmatprep.subr.mxu0 0.0
    %96 = vmatpush1.msra.mxu0 %v61
    %97 = vmatprep.subr.mxu0 0.0
    %98 = vmatpush1.msra.mxu0 %v62
    %99 = vmatprep.subr.mxu0 0.0
    %100 = vmatpush1.msra.mxu0 %v63
    %101 = vmatprep.subr.mxu0 0.0
    %102 = vmatpush1.msra.mxu0 %v64
    %103 = vmatprep.subr.mxu0 0.0
    %104 = vmatpush1.msra.mxu0 %v65
    %105 = vmatprep.subr.mxu0 0.0
    %106 = vmatpush1.msra.mxu0 0.0
    %107 = vmatprep.subr.mxu0 0.0
    %108 = vmatpush1.msra.mxu0 0.0
    %109 = vmatprep.subr.mxu0 0.0
    %110 = vmatpush1.msra.mxu0 0.0
    %111 = vmatprep.subr.mxu0 0.0
    %112 = vmatpush1.msra.mxu0 0.0
    %113 = vmatprep.subr.mxu0 0.0
    %114 = vmatpush1.msra.mxu0 0.0
    %115 = vmatprep.subr.mxu0 0.0
    %116 = vmatpush1.msra.mxu0 0.0
    %117 = vmatprep.subr.mxu0 0.0
    %118 = vmatpush1.msra.mxu0 0.0
    %119 = vmatprep.subr.mxu0 0.0
    %120 = vmatpush1.msra.mxu0 0.0
    %121 = vmatprep.subr.mxu0 0.0
    %122 = vmatpush1.msra.mxu0 0.0
    %123 = vmatprep.subr.mxu0 0.0
    %124 = vmatpush1.msra.mxu0 0.0
    %125 = vmatprep.subr.mxu0 0.0
    %126 = vmatpush1.msra.mxu0 0.0
    %127 = vmatprep.subr.mxu0 0.0
    %128 = vmatpush1.msra.mxu0 0.0
    %129 = vmatprep.subr.mxu0 0.0
    %130 = vmatpush1.msra.mxu0 0.0
    %131 = vmatprep.subr.mxu0 0.0
    %132 = vmatpush1.msra.mxu0 0.0
    %133 = vmatprep.subr.mxu0 0.0
    %134 = vmatpush1.msra.mxu0 0.0
    %135 = vmatprep.subr.mxu0 0.0
    %136 = vmatpush1.msra.mxu0 0.0
    %137 = vmatprep.mubr.f32.mxu0 0.0
    %138 = vmatmul.mubr.f32.gmra.mrb[0].mxu0 %v49
    %v139 = vpop.f32.mrb[0].mxu0
    %v140 = vadd.f32 %v71, %v139
    %v141 = vpop.f32.mrb[0].mxu0
    %142 = vdwg.mxu0
    %v143 = vmax.f32 %v140, 0.0
    %v144 = vld [vmem:[#allocation5] sm:$0xff]
    %v145 = vld [vmem:[#allocation5 + $0x8] sm:$0xff]
    %v146 = vld [vmem:[#allocation5 + $0x10] sm:$0xff]
    %v147 = vld [vmem:[#allocation5 + $0x18] sm:$0xff]
    %v148 = vld [vmem:[#allocation5 + $0x20] sm:$0xff]
    %v149 = vld [vmem:[#allocation5 + $0x28] sm:$0xff]
    %v150 = vld [vmem:[#allocation5 + $0x30] sm:$0xff]
    %v151 = vld [vmem:[#allocation5 + $0x38] sm:$0xff]
    %v152 = vld [vmem:[#allocation5 + $0x40] sm:$0xff]
    %v153 = vld [vmem:[#allocation5 + $0x48] sm:$0xff]
    %v154 = vld [vmem:[#allocation5 + $0x50] sm:$0xff]
    %v155 = vld [vmem:[#allocation5 + $0x58] sm:$0xff]
    %v156 = vld [vmem:[#allocation5 + $0x60] sm:$0xff]
    %v157 = vld [vmem:[#allocation5 + $0x68] sm:$0xff]
    %v158 = vld [vmem:[#allocation5 + $0x70] sm:$0xff]
    %v159 = vld [vmem:[#allocation5 + $0x78] sm:$0xff]
    %v160 = vld [vmem:[%s4] sm:$0x1]
    %v162 = vlaneseq
    %v163 = vshrl.u32 %v162, 7
    %v164 = vsub.s32 0, %v163
    %v165 = vrot.slane %v160, %v164
    %167 = vmatprep.subr.mxu0 0.0
    %168 = vmatpush1.msra.mxu0 %v144
    %169 = vmatprep.subr.mxu0 0.0
    %170 = vmatpush1.msra.mxu0 %v145
    %171 = vmatprep.subr.mxu0 0.0
    %172 = vmatpush1.msra.mxu0 %v146
    %173 = vmatprep.subr.mxu0 0.0
    %174 = vmatpush1.msra.mxu0 %v147
    %175 = vmatprep.subr.mxu0 0.0
    %176 = vmatpush1.msra.mxu0 %v148
    %177 = vmatprep.subr.mxu0 0.0
    %178 = vmatpush1.msra.mxu0 %v149
    %179 = vmatprep.subr.mxu0 0.0
    %180 = vmatpush1.msra.mxu0 %v150
    %181 = vmatprep.subr.mxu0 0.0
    %182 = vmatpush1.msra.mxu0 %v151
    %183 = vmatprep.subr.mxu0 0.0
    %184 = vmatpush1.msra.mxu0 %v152
    %185 = vmatprep.subr.mxu0 0.0
    %186 = vmatpush1.msra.mxu0 %v153
    %187 = vmatprep.subr.mxu0 0.0
    %188 = vmatpush1.msra.mxu0 %v154
    %189 = vmatprep.subr.mxu0 0.0
    %190 = vmatpush1.msra.mxu0 %v155
    %191 = vmatprep.subr.mxu0 0.0
    %192 = vmatpush1.msra.mxu0 %v156
    %193 = vmatprep.subr.mxu0 0.0
    %194 = vmatpush1.msra.mxu0 %v157
    %195 = vmatprep.subr.mxu0 0.0
    %196 = vmatpush1.msra.mxu0 %v158
    %197 = vmatprep.subr.mxu0 0.0
    %198 = vmatpush1.msra.mxu0 %v159
    %199 = vmatprep.subr.mxu0 0.0
    %200 = vmatpush1.msra.mxu0 0.0
    %201 = vmatprep.subr.mxu0 0.0
    %202 = vmatpush1.msra.mxu0 0.0
    %203 = vmatprep.subr.mxu0 0.0
    %204 = vmatpush1.msra.mxu0 0.0
    %205 = vmatprep.subr.mxu0 0.0
    %206 = vmatpush1.msra.mxu0 0.0
    %207 = vmatprep.subr.mxu0 0.0
    %208 = vmatpush1.msra.mxu0 0.0
    %209 = vmatprep.subr.mxu0 0.0
    %210 = vmatpush1.msra.mxu0 0.0
    %211 = vmatprep.subr.mxu0 0.0
    %212 = vmatpush1.msra.mxu0 0.0
    %213 = vmatprep.subr.mxu0 0.0
    %214 = vmatpush1.msra.mxu0 0.0
    %215 = vmatprep.subr.mxu0 0.0
    %216 = vmatpush1.msra.mxu0 0.0
    %217 = vmatprep.subr.mxu0 0.0
    %218 = vmatpush1.msra.mxu0 0.0
    %219 = vmatprep.subr.mxu0 0.0
    %220 = vmatpush1.msra.mxu0 0.0
    %221 = vmatprep.subr.mxu0 0.0
    %222 = vmatpush1.msra.mxu0 0.0
    %223 = vmatprep.subr.mxu0 0.0
    %224 = vmatpush1.msra.mxu0 0.0
    %225 = vmatprep.subr.mxu0 0.0
    %226 = vmatpush1.msra.mxu0 0.0
    %227 = vmatprep.subr.mxu0 0.0
    %228 = vmatpush1.msra.mxu0 0.0
    %229 = vmatprep.subr.mxu0 0.0
    %230 = vmatpush1.msra.mxu0 0.0
    %231 = vmatprep.mubr.f32.mxu0 0.0
    %232 = vmatmul.mubr.f32.gmra.mrb[0].mxu0 %v143
    %v233 = vpop.f32.mrb[0].mxu0
    %v234 = vadd.f32 %v165, %v233
    %v235 = vpop.f32.mrb[0].mxu0
    %236 = vdwg.mxu0
    %237 = vst [vmem:[#allocation7] sm:$0xff] %v234
    // Predicated region
    $region30: #{projection_head.1} parent=1 // pred_check
      _
    $region31: #{projection_head.1} parent=1 // pred_check_branch
      %239 = sbr.rel (0) target = $region33
    $region32: #{projection_head.1} parent=1 // pred_region
      %s241 = ssub.s32 128, 128
      %242 = vsyncadd [#allocation4], %s241
      %s244 = sshll.u32 [#allocation7], 4
      %s245 = int_to_ptr.vmem [resolvable:$true] %s244
      %247 = dma.vmem_to_hbm [thread:$0]  %s245, 128, %s5, [#allocation4]
    $region33: #{projection_head.1} parent=1 // pred_fallthru
      _
    // Predicated region
    $region34: #{projection_head.1} parent=1 // pred_check
      _
    $region35: #{projection_head.1} parent=1 // pred_check_branch
      %249 = sbr.rel (0) target = $region37
    $region36: #{projection_head.1} parent=1 // pred_region
      %250 = dma.done [#allocation4], 128
    $region37: #{projection_head.1} parent=1 // pred_fallthru
      _
    %251 = vsyncpa [#allocation3], 1
    %252 = vsyncpa [#allocation6], 1
    %253 = vsyncpa [#allocation4], 1

// kernel: projection_head.1
$region0: #{projection_head.1}
  #allocation0 [shape = 'u32[]', space=smem, size = 0x4, offset = 0x4, fixed_abs, tag = 'smem constant byte address 0x4 - core index']
  #allocation1 [shape = 'u32[144,128]{1,0:T(1,128)}', space=vmem, size = 0x12000, scoped, tag = 'internal scratch']
  %s0 = inlined_call_operand.vmem [shape: f32[8,128], index: 0, kind: input, shape index: {}]
  %s1 = inlined_call_operand.hbm [shape: f32[128,128], index: 1, kind: input, shape index: {}]
  %s2 = inlined_call_operand.vmem [shape: f32[1,128], index: 2, kind: input, shape index: {}]
  %s3 = inlined_call_operand.hbm [shape: f32[128,128], index: 3, kind: input, shape index: {}]
  %s4 = inlined_call_operand.vmem [shape: f32[1,128], index: 4, kind: input, shape index: {}]
  %s5 = inlined_call_operand.hbm [shape: f32[8,128], index: 5, kind: output, shape index: {}]
  %s6 = sld [smem:[#allocation0]]
  $region38: #{projection_head.1} parent=0
    _
  %s8 = ssub.s32 1, %s6
  %s9 = scalar_select 0, %s8, %s6
  $region1: #{projection_head.1} parent=0
    #allocation2 [shape = 'u8[65536]{0}', space=vmem, size = 0x10000, scoped, tag = 'input window, operand 1, single buffered']
    #allocation3 [shape = 's32[1]{0}', space=sflag, size = 0x4, scoped, tag = 'scoped memory for projection_head.1']
    #allocation4 [shape = 's32[1]{0}', space=sflag, size = 0x4, scoped, tag = 'scoped memory for projection_head.1']
    #allocation5 [shape = 'u8[65536]{0}', space=vmem, size = 0x10000, scoped, tag = 'input window, operand 3, single buffered']
    #allocation6 [shape = 's32[1]{0}', space=sflag, size = 0x4, scoped, tag = 'scoped memory for projection_head.1']
    #allocation7 [shape = 'u8[4096]{0}', space=vmem, size = 0x1000, scoped, tag = 'output window, operand 0, single buffered']
    %10 = vsyncpa [#allocation3], 0
    %11 = vsyncpa [#allocation6], 0
    %12 = vsyncpa [#allocation4], 0
    // Predicated region
    $region2: #{projection_head.1} parent=1 // pred_check
      _
    $region3: #{projection_head.1} parent=1 // pred_check_branch
      %14 = sbr.rel (0) target = $region5
    $region4: #{projection_head.1} parent=1 // pred_region
      _
    $region5: #{projection_head.1} parent=1 // pred_fallthru
      _
    // Predicated region
    $region6: #{projection_head.1} parent=1 // pred_check
      _
    $region7: #{projection_head.1} parent=1 // pred_check_branch
      %16 = sbr.rel (0) target = $region9
    $region8: #{projection_head.1} parent=1 // pred_region
      %s18 = ssub.s32 2048, 2048
      %19 = vsyncadd [#allocation3], %s18
      %s20 = sshll.u32 [#allocation2], 4
      %s21 = int_to_ptr.vmem [resolvable:$true] %s20
      %26 = dma.hbm_to_vmem [thread:$0]  %s1, 2048, %s21, [#allocation3], 128, 128, 8
    $region9: #{projection_head.1} parent=1 // pred_fallthru
      _
    // Predicated region
    $region10: #{projection_head.1} parent=1 // pred_check
      _
    $region11: #{projection_head.1} parent=1 // pred_check_branch
      %28 = sbr.rel (0) target = $region13
    $region12: #{projection_head.1} parent=1 // pred_region
      _
    $region13: #{projection_head.1} parent=1 // pred_fallthru
      _
    // Predicated region
    $region14: #{projection_head.1} parent=1 // pred_check
      _
    $region15: #{projection_head.1} parent=1 // pred_check_branch
      %30 = sbr.rel (0) target = $region17
    $region16: #{projection_head.1} parent=1 // pred_region
      %s32 = ssub.s32 2048, 2048
      %33 = vsyncadd [#allocation6], %s32
      %s34 = sshll.u32 [#allocation5], 4
      %s35 = int_to_ptr.vmem [resolvable:$true] %s34
      %40 = dma.hbm_to_vmem [thread:$0]  %s3, 2048, %s35, [#allocation6], 128, 128, 8
    $region17: #{projection_head.1} parent=1 // pred_fallthru
      _
    // Predicated region
    $region18: #{projection_head.1} parent=1 // pred_check
      _
    $region19: #{projection_head.1} parent=1 // pred_check_branch
      %42 = sbr.rel (0) target = $region21
    $region20: #{projection_head.1} parent=1 // pred_region
      _
    $region21: #{projection_head.1} parent=1 // pred_fallthru
      _
    // Predicated region
    $region22: #{projection_head.1} parent=1 // pred_check
      _
    $region23: #{projection_head.1} parent=1 // pred_check_branch
      %44 = sbr.rel (0) target = $region25
    $region24: #{projection_head.1} parent=1 // pred_region
      %45 = dma.done [#allocation3], 2048
    $region25: #{projection_head.1} parent=1 // pred_fallthru
      _
    // Predicated region
    $region26: #{projection_head.1} parent=1 // pred_check
      _
    $region27: #{projection_head.1} parent=1 // pred_check_branch
      %47 = sbr.rel (0) target = $region29
    $region28: #{projection_head.1} parent=1 // pred_region
      %48 = dma.done [#allocation6], 2048
    $region29: #{projection_head.1} parent=1 // pred_fallthru
      _
    %v49 = vld [vmem:[%s0] sm:$0xff]
    %v50 = vld [vmem:[#allocation2] sm:$0xff]
    %v51 = vld [vmem:[#allocation2 + $0x8] sm:$0xff]
    %v52 = vld [vmem:[#allocation2 + $0x10] sm:$0xff]
    %v53 = vld [vmem:[#allocation2 + $0x18] sm:$0xff]
    %v54 = vld [vmem:[#allocation2 + $0x20] sm:$0xff]
    %v55 = vld [vmem:[#allocation2 + $0x28] sm:$0xff]
    %v56 = vld [vmem:[#allocation2 + $0x30] sm:$0xff]
    %v57 = vld [vmem:[#allocation2 + $0x38] sm:$0xff]
    %v58 = vld [vmem:[#allocation2 + $0x40] sm:$0xff]
    %v59 = vld [vmem:[#allocation2 + $0x48] sm:$0xff]
    %v60 = vld [vmem:[#allocation2 + $0x50] sm:$0xff]
    %v61 = vld [vmem:[#allocation2 + $0x58] sm:$0xff]
    %v62 = vld [vmem:[#allocation2 + $0x60] sm:$0xff]
    %v63 = vld [vmem:[#allocation2 + $0x68] sm:$0xff]
    %v64 = vld [vmem:[#allocation2 + $0x70] sm:$0xff]
    %v65 = vld [vmem:[#allocation2 + $0x78] sm:$0xff]
    %v66 = vld [vmem:[%s2] sm:$0x1]
    %v68 = vlaneseq
    %v69 = vshrl.u32 %v68, 7
    %v70 = vsub.s32 0, %v69
    %v71 = vrot.slane %v66, %v70
    %73 = vmatprep.subr.mxu0 0.0
    %74 = vmatpush1.msra.mxu0 %v50
    %75 = vmatprep.subr.mxu0 0.0
    %76 = vmatpush1.msra.mxu0 %v51
    %77 = vmatprep.subr.mxu0 0.0
    %78 = vmatpush1.msra.mxu0 %v52
    %79 = vmatprep.subr.mxu0 0.0
    %80 = vmatpush1.msra.mxu0 %v53
    %81 = vmatprep.subr.mxu0 0.0
    %82 = vmatpush1.msra.mxu0 %v54
    %83 = vmatprep.subr.mxu0 0.0
    %84 = vmatpush1.msra.mxu0 %v55
    %85 = vmatprep.subr.mxu0 0.0
    %86 = vmatpush1.msra.mxu0 %v56
    %87 = vmatprep.subr.mxu0 0.0
    %88 = vmatpush1.msra.mxu0 %v57
    %89 = vmatprep.subr.mxu0 0.0
    %90 = vmatpush1.msra.mxu0 %v58
    %91 = vmatprep.subr.mxu0 0.0
    %92 = vmatpush1.msra.mxu0 %v59
    %93 = vmatprep.subr.mxu0 0.0
    %94 = vmatpush1.msra.mxu0 %v60
    %95 = vmatprep.subr.mxu0 0.0
    %96 = vmatpush1.msra.mxu0 %v61
    %97 = vmatprep.subr.mxu0 0.0
    %98 = vmatpush1.msra.mxu0 %v62
    %99 = vmatprep.subr.mxu0 0.0
    %100 = vmatpush1.msra.mxu0 %v63
    %101 = vmatprep.subr.mxu0 0.0
    %102 = vmatpush1.msra.mxu0 %v64
    %103 = vmatprep.subr.mxu0 0.0
    %104 = vmatpush1.msra.mxu0 %v65
    %105 = vmatprep.subr.mxu0 0.0
    %106 = vmatpush1.msra.mxu0 0.0
    %107 = vmatprep.subr.mxu0 0.0
    %108 = vmatpush1.msra.mxu0 0.0
    %109 = vmatprep.subr.mxu0 0.0
    %110 = vmatpush1.msra.mxu0 0.0
    %111 = vmatprep.subr.mxu0 0.0
    %112 = vmatpush1.msra.mxu0 0.0
    %113 = vmatprep.subr.mxu0 0.0
    %114 = vmatpush1.msra.mxu0 0.0
    %115 = vmatprep.subr.mxu0 0.0
    %116 = vmatpush1.msra.mxu0 0.0
    %117 = vmatprep.subr.mxu0 0.0
    %118 = vmatpush1.msra.mxu0 0.0
    %119 = vmatprep.subr.mxu0 0.0
    %120 = vmatpush1.msra.mxu0 0.0
    %121 = vmatprep.subr.mxu0 0.0
    %122 = vmatpush1.msra.mxu0 0.0
    %123 = vmatprep.subr.mxu0 0.0
    %124 = vmatpush1.msra.mxu0 0.0
    %125 = vmatprep.subr.mxu0 0.0
    %126 = vmatpush1.msra.mxu0 0.0
    %127 = vmatprep.subr.mxu0 0.0
    %128 = vmatpush1.msra.mxu0 0.0
    %129 = vmatprep.subr.mxu0 0.0
    %130 = vmatpush1.msra.mxu0 0.0
    %131 = vmatprep.subr.mxu0 0.0
    %132 = vmatpush1.msra.mxu0 0.0
    %133 = vmatprep.subr.mxu0 0.0
    %134 = vmatpush1.msra.mxu0 0.0
    %135 = vmatprep.subr.mxu0 0.0
    %136 = vmatpush1.msra.mxu0 0.0
    %137 = vmatprep.mubr.f32.mxu0 0.0
    %138 = vmatmul.mubr.f32.gmra.mrb[0].mxu0 %v49
    %v139 = vpop.f32.mrb[0].mxu0
    %v140 = vadd.f32 %v71, %v139
    %v141 = vpop.f32.mrb[0].mxu0
    %142 = vdwg.mxu0
    %v143 = vmax.f32 %v140, 0.0
    %v144 = vld [vmem:[#allocation5] sm:$0xff]
    %v145 = vld [vmem:[#allocation5 + $0x8] sm:$0xff]
    %v146 = vld [vmem:[#allocation5 + $0x10] sm:$0xff]
    %v147 = vld [vmem:[#allocation5 + $0x18] sm:$0xff]
    %v148 = vld [vmem:[#allocation5 + $0x20] sm:$0xff]
    %v149 = vld [vmem:[#allocation5 + $0x28] sm:$0xff]
    %v150 = vld [vmem:[#allocation5 + $0x30] sm:$0xff]
    %v151 = vld [vmem:[#allocation5 + $0x38] sm:$0xff]
    %v152 = vld [vmem:[#allocation5 + $0x40] sm:$0xff]
    %v153 = vld [vmem:[#allocation5 + $0x48] sm:$0xff]
    %v154 = vld [vmem:[#allocation5 + $0x50] sm:$0xff]
    %v155 = vld [vmem:[#allocation5 + $0x58] sm:$0xff]
    %v156 = vld [vmem:[#allocation5 + $0x60] sm:$0xff]
    %v157 = vld [vmem:[#allocation5 + $0x68] sm:$0xff]
    %v158 = vld [vmem:[#allocation5 + $0x70] sm:$0xff]
    %v159 = vld [vmem:[#allocation5 + $0x78] sm:$0xff]
    %v160 = vld [vmem:[%s4] sm:$0x1]
    %v162 = vlaneseq
    %v163 = vshrl.u32 %v162, 7
    %v164 = vsub.s32 0, %v163
    %v165 = vrot.slane %v160, %v164
    %167 = vmatprep.subr.mxu0 0.0
    %168 = vmatpush1.msra.mxu0 %v144
    %169 = vmatprep.subr.mxu0 0.0
    %170 = vmatpush1.msra.mxu0 %v145
    %171 = vmatprep.subr.mxu0 0.0
    %172 = vmatpush1.msra.mxu0 %v146
    %173 = vmatprep.subr.mxu0 0.0
    %174 = vmatpush1.msra.mxu0 %v147
    %175 = vmatprep.subr.mxu0 0.0
    %176 = vmatpush1.msra.mxu0 %v148
    %177 = vmatprep.subr.mxu0 0.0
    %178 = vmatpush1.msra.mxu0 %v149
    %179 = vmatprep.subr.mxu0 0.0
    %180 = vmatpush1.msra.mxu0 %v150
    %181 = vmatprep.subr.mxu0 0.0
    %182 = vmatpush1.msra.mxu0 %v151
    %183 = vmatprep.subr.mxu0 0.0
    %184 = vmatpush1.msra.mxu0 %v152
    %185 = vmatprep.subr.mxu0 0.0
    %186 = vmatpush1.msra.mxu0 %v153
    %187 = vmatprep.subr.mxu0 0.0
    %188 = vmatpush1.msra.mxu0 %v154
    %189 = vmatprep.subr.mxu0 0.0
    %190 = vmatpush1.msra.mxu0 %v155
    %191 = vmatprep.subr.mxu0 0.0
    %192 = vmatpush1.msra.mxu0 %v156
    %193 = vmatprep.subr.mxu0 0.0
    %194 = vmatpush1.msra.mxu0 %v157
    %195 = vmatprep.subr.mxu0 0.0
    %196 = vmatpush1.msra.mxu0 %v158
    %197 = vmatprep.subr.mxu0 0.0
    %198 = vmatpush1.msra.mxu0 %v159
    %199 = vmatprep.subr.mxu0 0.0
    %200 = vmatpush1.msra.mxu0 0.0
    %201 = vmatprep.subr.mxu0 0.0
    %202 = vmatpush1.msra.mxu0 0.0
    %203 = vmatprep.subr.mxu0 0.0
    %204 = vmatpush1.msra.mxu0 0.0
    %205 = vmatprep.subr.mxu0 0.0
    %206 = vmatpush1.msra.mxu0 0.0
    %207 = vmatprep.subr.mxu0 0.0
    %208 = vmatpush1.msra.mxu0 0.0
    %209 = vmatprep.subr.mxu0 0.0
    %210 = vmatpush1.msra.mxu0 0.0
    %211 = vmatprep.subr.mxu0 0.0
    %212 = vmatpush1.msra.mxu0 0.0
    %213 = vmatprep.subr.mxu0 0.0
    %214 = vmatpush1.msra.mxu0 0.0
    %215 = vmatprep.subr.mxu0 0.0
    %216 = vmatpush1.msra.mxu0 0.0
    %217 = vmatprep.subr.mxu0 0.0
    %218 = vmatpush1.msra.mxu0 0.0
    %219 = vmatprep.subr.mxu0 0.0
    %220 = vmatpush1.msra.mxu0 0.0
    %221 = vmatprep.subr.mxu0 0.0
    %222 = vmatpush1.msra.mxu0 0.0
    %223 = vmatprep.subr.mxu0 0.0
    %224 = vmatpush1.msra.mxu0 0.0
    %225 = vmatprep.subr.mxu0 0.0
    %226 = vmatpush1.msra.mxu0 0.0
    %227 = vmatprep.subr.mxu0 0.0
    %228 = vmatpush1.msra.mxu0 0.0
    %229 = vmatprep.subr.mxu0 0.0
    %230 = vmatpush1.msra.mxu0 0.0
    %231 = vmatprep.mubr.f32.mxu0 0.0
    %232 = vmatmul.mubr.f32.gmra.mrb[0].mxu0 %v143
    %v233 = vpop.f32.mrb[0].mxu0
    %v234 = vadd.f32 %v165, %v233
    %v235 = vpop.f32.mrb[0].mxu0
    %236 = vdwg.mxu0
    %237 = vst [vmem:[#allocation7] sm:$0xff] %v234
    // Predicated region
    $region30: #{projection_head.1} parent=1 // pred_check
      _
    $region31: #{projection_head.1} parent=1 // pred_check_branch
      %239 = sbr.rel (0) target = $region33
    $region32: #{projection_head.1} parent=1 // pred_region
      %s241 = ssub.s32 128, 128
      %242 = vsyncadd [#allocation4], %s241
      %s244 = sshll.u32 [#allocation7], 4
      %s245 = int_to_ptr.vmem [resolvable:$true] %s244
      %247 = dma.vmem_to_hbm [thread:$0]  %s245, 128, %s5, [#allocation4]
    $region33: #{projection_head.1} parent=1 // pred_fallthru
      _
    // Predicated region
    $region34: #{projection_head.1} parent=1 // pred_check
      _
    $region35: #{projection_head.1} parent=1 // pred_check_branch
      %249 = sbr.rel (0) target = $region37
    $region36: #{projection_head.1} parent=1 // pred_region
      %250 = dma.done [#allocation4], 128
    $region37: #{projection_head.1} parent=1 // pred_fallthru
      _
    %251 = vsyncpa [#allocation3], 1
    %252 = vsyncpa [#allocation6], 1
    %253 = vsyncpa [#allocation4], 1

</llo_original>
